<compile_context>
chip_gen: v6e
topology: v6e:2x2x1
jax: 0.10.0
libtpu: 0.0.40
codegen_flags: <defaults>
</compile_context>

<pallas_src>
import functools

import jax
import jax.numpy as jnp
from jax.experimental import pallas as pl
from jax.experimental.pallas import tpu as pltpu

EPS = 1e-12  # matches the module's default (eps=EPS), not PyTorch's BN default 1e-5


def _round_up(n, m):
    return -(-n // m) * m


def _tile_candidates(full, cap):
    """Multiples of 128 that divide `full` (itself a multiple of 128), <= cap, descending."""
    cands = [t for t in range(128, min(full, cap) + 1, 128) if full % t == 0]
    return sorted(cands, reverse=True)


def _plan(batch, cin, cout, mm_itemsize):
    """Pick (TN, TK, Cin_p, Cout_p, x_resident, vmem_limit_bytes)."""
    budget = 48 << 20          # conservative working-set target (fits v7x's 64 MiB VMEM)
    cin_p = _round_up(cin, 128)
    cout_p = _round_up(cout, 128)

    tk_cands = _tile_candidates(cin_p, 1024)
    tn_cands = _tile_candidates(cout_p, 512)
    # prefer >= 2 N tiles on the "parallel" j axis so both v7x TensorCores get work
    tn_cands = [t for t in tn_cands if cout_p // t >= 2] or tn_cands

    def usage(tk, tn, resident):
        x = 2 * batch * (cin_p if resident else tk) * mm_itemsize   # double-buffered x
        w = 2 * tk * tn * mm_itemsize                               # double-buffered W^T tile
        o = 2 * batch * tn * 4                                      # f32 output tile
        gb = 2 * 2 * tn * 4                                         # gamma/beta row pair
        return x + w + o + gb

    tk, tn = tk_cands[0], tn_cands[0]
    x_resident = usage(tk, tn, True) <= budget
    if not x_resident:
        ti, ni = 0, 0
        while usage(tk_cands[ti], tn_cands[ni], False) > budget:
            if ti + 1 < len(tk_cands):
                ti += 1
            elif ni + 1 < len(tn_cands):
                ni += 1
            else:
                break
        tk, tn = tk_cands[ti], tn_cands[ni]

    vmem_limit = int(min(56 << 20, max(usage(tk, tn, x_resident) + (2 << 20), 32 << 20)))
    return tn, tk, cin_p, cout_p, x_resident, vmem_limit


def _pad2(a, rows, cols, dtype):
    a = a.astype(dtype)
    pr, pc = rows - a.shape[0], cols - a.shape[1]
    if pr or pc:
        a = jnp.pad(a, ((0, pr), (0, pc)))
    return a


def _transform_block1d_kernel(x_ref, wt_ref, gb_ref, o_ref, *,
                              eps, use_nonlinear, tk, inv_b, x_resident):
    k = pl.program_id(1)

    @pl.when(k == 0)
    def _():
        o_ref[...] = jnp.zeros_like(o_ref)

    if x_resident:
        start = pl.multiple_of(k * tk, tk)
        x_tile = x_ref[:, pl.ds(start, tk)]       # resident x: slice the K chunk in VMEM
    else:
        x_tile = x_ref[...]

    # Linear partial product on this K tile: (B, TK) @ (TK, TN) -> (B, TN), f32 accumulate
    # directly into the VMEM-resident output block (its index is constant across k).
    o_ref[...] += jnp.dot(x_tile, wt_ref[...], preferred_element_type=jnp.float32)

    @pl.when(k == pl.num_programs(1) - 1)
    def _():
        y = o_ref[...]                                                     # (B, TN) f32
        # BatchNorm1d, training semantics: per-feature batch stats, biased variance.
        # Single sweep: sum and sum-of-squares; clamp var >= 0 against cancellation.
        mean = jnp.sum(y, axis=0, keepdims=True) * inv_b                   # (1, TN)
        var = jnp.maximum(jnp.sum(y * y, axis=0, keepdims=True) * inv_b - mean * mean, 0.0)
        s = gb_ref[0:1, :] * jax.lax.rsqrt(var + eps)                      # gamma row
        t = gb_ref[1:2, :] - mean * s                                      # beta row
        out = y * s + t
        if use_nonlinear:
            out = jnp.maximum(out, 0.0)
        o_ref[...] = out


def prepare_transform_block1d_params(weight, gamma, beta, *, batch,
                                     matmul_dtype=jnp.float32):
    """Hoisted, call-once parameter prep: pre-transposed/padded (K, N) weight + BN rows."""
    cout, cin = weight.shape
    mm_itemsize = jnp.dtype(matmul_dtype).itemsize
    tn, tk, cin_p, cout_p, x_resident, vmem_limit = _plan(batch, cin, cout, mm_itemsize)

    wt_p = _pad2(weight.T, cin_p, cout_p, matmul_dtype)                    # MXU-native (K, N)
    gb_p = _pad2(jnp.stack([gamma, beta], axis=0), 2, cout_p, jnp.float32)  # (2, Cout_p)

    return dict(wt=wt_p, gb=gb_p, TN=tn, TK=tk, Cin=cin, Cout=cout,
                Cin_p=cin_p, Cout_p=cout_p, x_resident=x_resident,
                vmem_limit=vmem_limit, matmul_dtype=matmul_dtype)


def apply_transform_block1d(x, params, *, eps=EPS, nonlinear=True):
    """x: (B, Cin). Linear -> BatchNorm1d (training-mode batch stats) -> optional ReLU."""
    b, cin = x.shape
    assert cin == params["Cin"]
    tn, tk = params["TN"], params["TK"]
    cin_p, cout_p = params["Cin_p"], params["Cout_p"]
    cout = params["Cout"]
    x_resident = params["x_resident"]
    mm_dtype = params["matmul_dtype"]
    mm_itemsize = jnp.dtype(mm_dtype).itemsize

    x_p = x.astype(mm_dtype)
    if cin_p != cin:
        x_p = jnp.pad(x_p, ((0, 0), (0, cin_p - cin)))

    grid = (cout_p // tn, cin_p // tk)   # (parallel N tiles, reduction K tiles last)

    if x_resident:
        x_spec = pl.BlockSpec((b, cin_p), lambda j, k: (0, 0))   # single DMA, VMEM-resident
    else:
        x_spec = pl.BlockSpec((b, tk), lambda j, k: (0, k))

    kernel = functools.partial(_transform_block1d_kernel,
                               eps=eps, use_nonlinear=nonlinear,
                               tk=tk, inv_b=1.0 / b, x_resident=x_resident)

    x_reads = 1 if x_resident else grid[0]
    cost = pl.CostEstimate(
        flops=2 * b * cin_p * cout_p,
        transcendentals=cout_p,  # rsqrt per feature
        bytes_accessed=int(mm_itemsize * (x_reads * b * cin_p + cin_p * cout_p)
                           + 4 * (2 * cout_p + b * cout_p)),
    )

    out_p = pl.pallas_call(
        kernel,
        out_shape=jax.ShapeDtypeStruct((b, cout_p), jnp.float32),
        grid_spec=pltpu.PrefetchScalarGridSpec(
            num_scalar_prefetch=0,
            grid=grid,
            in_specs=[
                x_spec,                                            # x (resident or K-tiled)
                pl.BlockSpec((tk, tn), lambda j, k: (k, j)),       # W^T tile (K, N)
                pl.BlockSpec((2, tn), lambda j, k: (0, j)),        # [gamma; beta] rows
            ],
            out_specs=pl.BlockSpec((b, tn), lambda j, k: (0, j)),  # resident across k
        ),
        compiler_params=pltpu.CompilerParams(
            dimension_semantics=("parallel", "arbitrary"),
            vmem_limit_bytes=params["vmem_limit"],
        ),
        cost_estimate=cost,
    )(x_p, params["wt"], params["gb"])

    return out_p[:, :cout] if cout_p != cout else out_p


def transform_block1d(x, weight, bias, gamma, beta, *, eps=EPS, nonlinear=True,
                      matmul_dtype=jnp.float32):
    """Convenience one-shot API (prefer prepare_* + apply_* to hoist the weight prep)."""
    del bias  # cancels exactly under training-mode BN (y - mean); kept for API parity
    params = prepare_transform_block1d_params(weight, gamma, beta, batch=x.shape[0],
                                              matmul_dtype=matmul_dtype)
    return apply_transform_block1d(x, params, eps=eps, nonlinear=nonlinear)


def _reference(x, weight, bias, gamma, beta, eps=EPS, nonlinear=True):
    y = x @ weight.T + bias
    mean = jnp.mean(y, axis=0, keepdims=True)
    var = jnp.mean((y - mean) ** 2, axis=0, keepdims=True)  # biased, training mode
    out = (y - mean) / jnp.sqrt(var + eps) * gamma + beta
    if nonlinear:
        out = jnp.maximum(out, 0.0)
    return out


if __name__ == "__main__":
    B, Cin, Cout = 8, 32, 64  # small (batch, channels) shapes consistent with the module

    key = jax.random.PRNGKey(0)
    kx, kw, kb, kg, kbe = jax.random.split(key, 5)

    x = jax.random.normal(kx, (B, Cin), dtype=jnp.float32)
    weight = jax.random.normal(kw, (Cout, Cin), dtype=jnp.float32) * (1.0 / jnp.sqrt(Cin))
    bias = 0.1 * jax.random.normal(kb, (Cout,), dtype=jnp.float32)
    gamma = 1.0 + 0.05 * jax.random.normal(kg, (Cout,), dtype=jnp.float32)
    beta = 0.05 * jax.random.normal(kbe, (Cout,), dtype=jnp.float32)

    # Parameter prep hoisted out of the per-call path (done once, reused below).
    params = prepare_transform_block1d_params(weight, gamma, beta, batch=B)

    ok = True
    for nl in (True, False):
        out = jax.block_until_ready(apply_transform_block1d(x, params, nonlinear=nl))
        ref = _reference(x, weight, bias, gamma, beta, nonlinear=nl)
        assert out.shape == (B, Cout)
        ok = ok and bool(jnp.allclose(out, ref, atol=1e-4, rtol=1e-4))
    assert ok, "f32 path mismatch vs reference"

    # Optional bf16 MXU path (halves the weight HBM stream); looser tolerance vs f32 ref.
    params_bf16 = prepare_transform_block1d_params(weight, gamma, beta, batch=B,
                                                   matmul_dtype=jnp.bfloat16)
    out_bf16 = jax.block_until_ready(apply_transform_block1d(x, params_bf16, nonlinear=True))
    ref = _reference(x, weight, bias, gamma, beta, nonlinear=True)
    assert bool(jnp.allclose(out_bf16, ref, atol=1e-1, rtol=1e-1)), "bf16 path mismatch"

    print("KERNEL_OK")
</pallas_src>

<mosaic_0001>
module attributes {stable_mosaic.version = 11 : i64} {
  func.func @_transform_block1d_kernel(%arg0: i32, %arg1: i32, %arg2: memref<8x128xf32, #tpu.memory_space<vmem>>, %arg3: memref<128x128xf32, #tpu.memory_space<vmem>>, %arg4: memref<2x128xf32, #tpu.memory_space<vmem>>, %arg5: memref<8x128xf32, #tpu.memory_space<vmem>>) attributes {dimension_semantics = [#tpu.dimension_semantics<parallel>, #tpu.dimension_semantics<arbitrary>], iteration_bounds = array<i64: 1, 1>, scalar_prefetch = 0 : i64, scratch_operands = 0 : i64, tpu.core_type = #tpu.core_type<tc>, window_params = [{pipeline_mode = #tpu.pipeline_mode<synchronous>, transform_indices = @transform_0, window_bounds = array<i64: 8, 128>}, {transform_indices = @transform_1, window_bounds = array<i64: 128, 128>}, {transform_indices = @transform_2, window_bounds = array<i64: 2, 128>}, {transform_indices = @transform_3, window_bounds = array<i64: 8, 128>}]} {
    %c0_i32 = arith.constant 0 : i32
    %0 = arith.cmpi eq, %arg1, %c0_i32 : i32
    %1 = arith.extui %0 : i1 to i32
    %c0_i32_0 = arith.constant 0 : i32
    %2 = arith.cmpi ne, %1, %c0_i32_0 : i32
    scf.if %2 {
      %cst_9 = arith.constant 0.000000e+00 : f32
      %15 = vector.broadcast %cst_9 : f32 to vector<8x128xf32>
      %c0_10 = arith.constant 0 : index
      %c0_11 = arith.constant 0 : index
      %16 = vector.load %arg5[%c0_10, %c0_11] : memref<8x128xf32, #tpu.memory_space<vmem>>, vector<8x128xf32>
      tpu.vector_store %arg5[%c0_10, %c0_11], %15 {strides = array<i32>} : memref<8x128xf32, #tpu.memory_space<vmem>>, vector<8x128xf32>,
    } else {
    }
    %c128_i32 = arith.constant 128 : i32
    %3 = arith.muli %arg1, %c128_i32 : i32
    %4 = tpu.assume_multiple %3, 128 : i32
    %c0 = arith.constant 0 : index
    %5 = arith.index_cast %4 : i32 to index
    %6 = vector.load %arg2[%c0, %5] : memref<8x128xf32, #tpu.memory_space<vmem>>, vector<8x128xf32>
    %c0_1 = arith.constant 0 : index
    %c0_2 = arith.constant 0 : index
    %7 = vector.load %arg5[%c0_1, %c0_2] : memref<8x128xf32, #tpu.memory_space<vmem>>, vector<8x128xf32>
    %c0_3 = arith.constant 0 : index
    %c0_4 = arith.constant 0 : index
    %8 = vector.load %arg3[%c0_3, %c0_4] : memref<128x128xf32, #tpu.memory_space<vmem>>, vector<128x128xf32>
    %cst = arith.constant dense<0.000000e+00> : vector<8x128xf32>
    %9 = tpu.matmul %6, %8, %cst {dimension_numbers = #tpu.dot_dimension_numbers<[1], [0], [0], [1], [0, 0, 1, 1], [], []>} : vector<8x128xf32>, vector<128x128xf32>, vector<8x128xf32> -> vector<8x128xf32>
    %10 = arith.addf %7, %9 : vector<8x128xf32>
    %c0_5 = arith.constant 0 : index
    %c0_6 = arith.constant 0 : index
    %11 = vector.load %arg5[%c0_5, %c0_6] : memref<8x128xf32, #tpu.memory_space<vmem>>, vector<8x128xf32>
    tpu.vector_store %arg5[%c0_5, %c0_6], %10 {strides = array<i32>} : memref<8x128xf32, #tpu.memory_space<vmem>>, vector<8x128xf32>,
    %c0_i32_7 = arith.constant 0 : i32
    %12 = arith.cmpi eq, %arg1, %c0_i32_7 : i32
    %13 = arith.extui %12 : i1 to i32
    %c0_i32_8 = arith.constant 0 : i32
    %14 = arith.cmpi ne, %13, %c0_i32_8 : i32
    scf.if %14 {
      %c0_9 = arith.constant 0 : index
      %c0_10 = arith.constant 0 : index
      %15 = vector.load %arg5[%c0_9, %c0_10] : memref<8x128xf32, #tpu.memory_space<vmem>>, vector<8x128xf32>
      %cst_11 = arith.constant dense<0.000000e+00> : vector<128xf32>
      %16 = vector.multi_reduction <add>, %15, %cst_11 [0] : vector<8x128xf32> to vector<128xf32>
      %17 = vector.shape_cast %16 : vector<128xf32> to vector<1x128xf32>
      %cst_12 = arith.constant 1.250000e-01 : f32
      %18 = vector.broadcast %cst_12 : f32 to vector<1x128xf32>
      %19 = arith.mulf %17, %18 : vector<1x128xf32>
      %20 = arith.mulf %15, %15 : vector<8x128xf32>
      %cst_13 = arith.constant dense<0.000000e+00> : vector<128xf32>
      %21 = vector.multi_reduction <add>, %20, %cst_13 [0] : vector<8x128xf32> to vector<128xf32>
      %22 = vector.shape_cast %21 : vector<128xf32> to vector<1x128xf32>
      %cst_14 = arith.constant 1.250000e-01 : f32
      %23 = vector.broadcast %cst_14 : f32 to vector<1x128xf32>
      %24 = arith.mulf %22, %23 : vector<1x128xf32>
      %25 = arith.mulf %19, %19 : vector<1x128xf32>
      %26 = arith.subf %24, %25 : vector<1x128xf32>
      %cst_15 = arith.constant 0.000000e+00 : f32
      %27 = vector.broadcast %cst_15 : f32 to vector<1x128xf32>
      %28 = arith.maximumf %26, %27 : vector<1x128xf32>
      %c0_16 = arith.constant 0 : index
      %c0_17 = arith.constant 0 : index
      %29 = vector.load %arg4[%c0_16, %c0_17] : memref<2x128xf32, #tpu.memory_space<vmem>>, vector<1x128xf32>
      %cst_18 = arith.constant 9.99999996E-13 : f32
      %30 = vector.broadcast %cst_18 : f32 to vector<1x128xf32>
      %31 = arith.addf %28, %30 : vector<1x128xf32>
      %32 = math.rsqrt %31 : vector<1x128xf32>
      %33 = arith.mulf %29, %32 : vector<1x128xf32>
      %c1 = arith.constant 1 : index
      %c0_19 = arith.constant 0 : index
      %34 = vector.load %arg4[%c1, %c0_19] : memref<2x128xf32, #tpu.memory_space<vmem>>, vector<1x128xf32>
      %35 = arith.mulf %19, %33 : vector<1x128xf32>
      %36 = arith.subf %34, %35 : vector<1x128xf32>
      %37 = vector.broadcast %33 : vector<1x128xf32> to vector<8x128xf32>
      %38 = arith.mulf %15, %37 : vector<8x128xf32>
      %39 = vector.broadcast %36 : vector<1x128xf32> to vector<8x128xf32>
      %40 = arith.addf %38, %39 : vector<8x128xf32>
      %cst_20 = arith.constant 0.000000e+00 : f32
      %41 = vector.broadcast %cst_20 : f32 to vector<8x128xf32>
      %42 = arith.maximumf %40, %41 : vector<8x128xf32>
      %c0_21 = arith.constant 0 : index
      %c0_22 = arith.constant 0 : index
      %43 = vector.load %arg5[%c0_21, %c0_22] : memref<8x128xf32, #tpu.memory_space<vmem>>, vector<8x128xf32>
      tpu.vector_store %arg5[%c0_21, %c0_22], %42 {strides = array<i32>} : memref<8x128xf32, #tpu.memory_space<vmem>>, vector<8x128xf32>,
    } else {
    }
    return
  }
  func.func @transform_0(%arg0: i32, %arg1: i32) -> (i32, i32) {
    %c0_i32 = arith.constant 0 : i32
    %c0_i32_0 = arith.constant 0 : i32
    %c0_i32_1 = arith.constant 0 : i32
    return %c0_i32, %c0_i32_0 : i32, i32
  }
  func.func @transform_1(%arg0: i32, %arg1: i32) -> (i32, i32) {
    %c0_i32 = arith.constant 0 : i32
    return %arg1, %arg0 : i32, i32
  }
  func.func @transform_2(%arg0: i32, %arg1: i32) -> (i32, i32) {
    %c0_i32 = arith.constant 0 : i32
    %c0_i32_0 = arith.constant 0 : i32
    return %c0_i32, %arg0 : i32, i32
  }
  func.func @transform_3(%arg0: i32, %arg1: i32) -> (i32, i32) {
    %c0_i32 = arith.constant 0 : i32
    %c0_i32_0 = arith.constant 0 : i32
    return %c0_i32, %arg0 : i32, i32
  }
}

</mosaic_0001>

<llo_original>
// kernel: tpu_custom_call.1
$region0: #{tpu_custom_call.1}
  #allocation0 [shape = 'u32[]', space=smem, size = 0x4, offset = 0x4, fixed_abs, tag = 'smem constant byte address 0x4 - core index']
  #allocation1 [shape = 'u32[144,128]{1,0:T(1,128)}', space=vmem, size = 0x12000, scoped, tag = 'internal scratch']
  %s0 = inlined_call_operand.hbm [shape: f32[8,128], index: 0, kind: input, shape index: {}]
  %s1 = inlined_call_operand.hbm [shape: f32[128,128], index: 1, kind: input, shape index: {}]
  %s2 = inlined_call_operand.vmem [shape: f32[2,128], index: 2, kind: input, shape index: {}]
  %s3 = inlined_call_operand.hbm [shape: f32[8,128], index: 3, kind: output, shape index: {}]
  %s4 = sld [smem:[#allocation0]]
  $region38: #{tpu_custom_call.1} parent=0
    _
  %s6 = ssub.s32 1, %s4
  %s7 = scalar_select 0, %s6, %s4
  $region1: #{tpu_custom_call.1} parent=0
    #allocation2 [shape = 'u8[4096]{0}', space=vmem, size = 0x1000, scoped, tag = 'input window, operand 0, single buffered']
    #allocation3 [shape = 's32[1]{0}', space=sflag, size = 0x4, scoped, tag = 'scoped memory for tpu_custom_call.1']
    #allocation4 [shape = 's32[1]{0}', space=sflag, size = 0x4, scoped, tag = 'scoped memory for tpu_custom_call.1']
    #allocation5 [shape = 'u8[65536]{0}', space=vmem, size = 0x10000, scoped, tag = 'input window, operand 1, single buffered']
    #allocation6 [shape = 's32[1]{0}', space=sflag, size = 0x4, scoped, tag = 'scoped memory for tpu_custom_call.1']
    #allocation7 [shape = 'u8[4096]{0}', space=vmem, size = 0x1000, scoped, tag = 'output window, operand 0, single buffered']
    %8 = vsyncpa [#allocation3], 0
    %9 = vsyncpa [#allocation6], 0
    %10 = vsyncpa [#allocation4], 0
    // Predicated region
    $region2: #{tpu_custom_call.1} parent=1 // pred_check
      _
    $region3: #{tpu_custom_call.1} parent=1 // pred_check_branch
      %12 = sbr.rel (0) target = $region5
    $region4: #{tpu_custom_call.1} parent=1 // pred_region
      %s14 = ssub.s32 128, 128
      %15 = vsyncadd [#allocation3], %s14
      %s17 = sshll.u32 [#allocation2], 4
      %s18 = int_to_ptr.vmem [resolvable:$true] %s17
      %20 = dma.hbm_to_vmem [thread:$0]  %s0, 128, %s18, [#allocation3]
    $region5: #{tpu_custom_call.1} parent=1 // pred_fallthru
      _
    // Predicated region
    $region6: #{tpu_custom_call.1} parent=1 // pred_check
      _
    $region7: #{tpu_custom_call.1} parent=1 // pred_check_branch
      %22 = sbr.rel (0) target = $region9
    $region8: #{tpu_custom_call.1} parent=1 // pred_region
      %s24 = ssub.s32 2048, 2048
      %25 = vsyncadd [#allocation6], %s24
      %s26 = sshll.u32 [#allocation5], 4
      %s27 = int_to_ptr.vmem [resolvable:$true] %s26
      %32 = dma.hbm_to_vmem [thread:$0]  %s1, 2048, %s27, [#allocation6], 128, 128, 8
    $region9: #{tpu_custom_call.1} parent=1 // pred_fallthru
      _
    // Predicated region
    $region10: #{tpu_custom_call.1} parent=1 // pred_check
      _
    $region11: #{tpu_custom_call.1} parent=1 // pred_check_branch
      %34 = sbr.rel (0) target = $region13
    $region12: #{tpu_custom_call.1} parent=1 // pred_region
      _
    $region13: #{tpu_custom_call.1} parent=1 // pred_fallthru
      _
    // Predicated region
    $region14: #{tpu_custom_call.1} parent=1 // pred_check
      _
    $region15: #{tpu_custom_call.1} parent=1 // pred_check_branch
      %36 = sbr.rel (0) target = $region17
    $region16: #{tpu_custom_call.1} parent=1 // pred_region
      %37 = dma.done [#allocation3], 128
    $region17: #{tpu_custom_call.1} parent=1 // pred_fallthru
      _
    // Predicated region
    $region18: #{tpu_custom_call.1} parent=1 // pred_check
      _
    $region19: #{tpu_custom_call.1} parent=1 // pred_check_branch
      %39 = sbr.rel (0) target = $region21
    $region20: #{tpu_custom_call.1} parent=1 // pred_region
      %40 = dma.done [#allocation6], 2048
    $region21: #{tpu_custom_call.1} parent=1 // pred_fallthru
      _
    %p41 = scmp.eq.s32.totalorder 0, 0
    // Predicated region
    $region22: #{tpu_custom_call.1} parent=1 // pred_check
      %p42 = pneg %p41
    $region23: #{tpu_custom_call.1} parent=1 // pred_check_branch
      %44 = sbr.rel (%p42) target = $region25
    $region24: #{tpu_custom_call.1} parent=1 // pred_region
      %45 = vst [vmem:[#allocation7] sm:$0xff] 0.0
    $region25: #{tpu_custom_call.1} parent=1 // pred_fallthru
      _
    %s46 = smul.u32 0, 128
    %s47 = sshra.s32 %s46, 7
    %s48 = sand.u32 %s46, 127
    %s49 = scalar_lea.vmem [#allocation2], %s47
    %v50 = vld [vmem:[%s49] sm:$0xff]
    %v51 = vld [vmem:[#allocation7] sm:$0xff]
    %v52 = vld [vmem:[#allocation5] sm:$0xff]
    %v53 = vld [vmem:[#allocation5 + $0x8] sm:$0xff]
    %v54 = vld [vmem:[#allocation5 + $0x10] sm:$0xff]
    %v55 = vld [vmem:[#allocation5 + $0x18] sm:$0xff]
    %v56 = vld [vmem:[#allocation5 + $0x20] sm:$0xff]
    %v57 = vld [vmem:[#allocation5 + $0x28] sm:$0xff]
    %v58 = vld [vmem:[#allocation5 + $0x30] sm:$0xff]
    %v59 = vld [vmem:[#allocation5 + $0x38] sm:$0xff]
    %v60 = vld [vmem:[#allocation5 + $0x40] sm:$0xff]
    %v61 = vld [vmem:[#allocation5 + $0x48] sm:$0xff]
    %v62 = vld [vmem:[#allocation5 + $0x50] sm:$0xff]
    %v63 = vld [vmem:[#allocation5 + $0x58] sm:$0xff]
    %v64 = vld [vmem:[#allocation5 + $0x60] sm:$0xff]
    %v65 = vld [vmem:[#allocation5 + $0x68] sm:$0xff]
    %v66 = vld [vmem:[#allocation5 + $0x70] sm:$0xff]
    %v67 = vld [vmem:[#allocation5 + $0x78] sm:$0xff]
    %68 = vmatprep.subr.mxu0 0.0
    %69 = vmatpush1.msra.mxu0 %v67
    %70 = vmatprep.subr.mxu0 0.0
    %71 = vmatpush1.msra.mxu0 %v66
    %72 = vmatprep.subr.mxu0 0.0
    %73 = vmatpush1.msra.mxu0 %v65
    %74 = vmatprep.subr.mxu0 0.0
    %75 = vmatpush1.msra.mxu0 %v64
    %76 = vmatprep.subr.mxu0 0.0
    %77 = vmatpush1.msra.mxu0 %v63
    %78 = vmatprep.subr.mxu0 0.0
    %79 = vmatpush1.msra.mxu0 %v62
    %80 = vmatprep.subr.mxu0 0.0
    %81 = vmatpush1.msra.mxu0 %v61
    %82 = vmatprep.subr.mxu0 0.0
    %83 = vmatpush1.msra.mxu0 %v60
    %84 = vmatprep.subr.mxu0 0.0
    %85 = vmatpush1.msra.mxu0 %v59
    %86 = vmatprep.subr.mxu0 0.0
    %87 = vmatpush1.msra.mxu0 %v58
    %88 = vmatprep.subr.mxu0 0.0
    %89 = vmatpush1.msra.mxu0 %v57
    %90 = vmatprep.subr.mxu0 0.0
    %91 = vmatpush1.msra.mxu0 %v56
    %92 = vmatprep.subr.mxu0 0.0
    %93 = vmatpush1.msra.mxu0 %v55
    %94 = vmatprep.subr.mxu0 0.0
    %95 = vmatpush1.msra.mxu0 %v54
    %96 = vmatprep.subr.mxu0 0.0
    %97 = vmatpush1.msra.mxu0 %v53
    %98 = vmatprep.subr.mxu0 0.0
    %99 = vmatpush1.msra.mxu0 %v52
    %100 = vmatprep.subr.mxu0 0.0
    %101 = vmatpush2.msra.mxu0 0.0
    %102 = vmatprep.subr.mxu0 0.0
    %103 = vmatpush2.msra.mxu0 0.0
    %104 = vmatprep.subr.mxu0 0.0
    %105 = vmatpush2.msra.mxu0 0.0
    %106 = vmatprep.subr.mxu0 0.0
    %107 = vmatpush2.msra.mxu0 0.0
    %108 = vmatprep.subr.mxu0 0.0
    %109 = vmatpush2.msra.mxu0 0.0
    %110 = vmatprep.subr.mxu0 0.0
    %111 = vmatpush2.msra.mxu0 0.0
    %112 = vmatprep.subr.mxu0 0.0
    %113 = vmatpush2.msra.mxu0 0.0
    %114 = vmatprep.subr.mxu0 0.0
    %115 = vmatpush2.msra.mxu0 0.0
    %116 = vmatprep.subr.mxu0 0.0
    %117 = vmatpush2.msra.mxu0 0.0
    %118 = vmatprep.subr.mxu0 0.0
    %119 = vmatpush2.msra.mxu0 0.0
    %120 = vmatprep.subr.mxu0 0.0
    %121 = vmatpush2.msra.mxu0 0.0
    %122 = vmatprep.subr.mxu0 0.0
    %123 = vmatpush2.msra.mxu0 0.0
    %124 = vmatprep.subr.mxu0 0.0
    %125 = vmatpush2.msra.mxu0 0.0
    %126 = vmatprep.subr.mxu0 0.0
    %127 = vmatpush2.msra.mxu0 0.0
    %128 = vmatprep.subr.mxu0 0.0
    %129 = vmatpush2.msra.mxu0 0.0
    %130 = vmatprep.subr.mxu0 0.0
    %131 = vmatpush2.msra.mxu0 0.0
    %132 = vmatprep.mubr.f32.mxu0 0.0
    %133 = vmatmul.mubr.f32.gmra.mxu0 %v50
    %v134 = vpop.f32.mrf.mxu0
    %v135 = vadd.f32 0.0, %v134
    %v136 = vpop.f32.mrf.mxu0
    %137 = vdwg.mxu0
    %v138 = vadd.f32 %v51, %v135
    %139 = vst [vmem:[#allocation7] sm:$0xff] %v138
    // Predicated region
    $region26: #{tpu_custom_call.1} parent=1 // pred_check
      %p140 = pneg %p41
    $region27: #{tpu_custom_call.1} parent=1 // pred_check_branch
      %142 = sbr.rel (%p140) target = $region29
    $region28: #{tpu_custom_call.1} parent=1 // pred_region
      %v143 = vld [vmem:[#allocation7] sm:$0xff]
      %v144 = vrot.slane %v143, 4
      %v145 = vadd.f32 %v143, %v144
      %v146 = vrot.slane %v145, 2
      %v147 = vadd.f32 %v145, %v146
      %v148 = vrot.slane %v147, 1
      %v149 = vadd.f32 %v147, %v148
      %v150 = vmul.f32 %v149, 0.125
      %v151 = vmul.f32 %v143, %v143
      %v152 = vrot.slane %v151, 4
      %v153 = vadd.f32 %v151, %v152
      %v154 = vrot.slane %v153, 2
      %v155 = vadd.f32 %v153, %v154
      %v156 = vrot.slane %v155, 1
      %v157 = vadd.f32 %v155, %v156
      %v158 = vmul.f32 %v157, 0.125
      %v159 = vmul.f32 %v150, %v150
      %v160 = vsub.f32 %v158, %v159
      %v161 = vmax.f32 %v160, 0.0
      %v162 = vld [vmem:[%s2] sm:$0x1]
      %v163 = vadd.f32 %v161, 1e-12
      %v164 = vrsqrt.pop %v163
      %v165 = vmul.f32 %v162, %v164
      %v166 = vld [vmem:[%s2 + $0x1] sm:$0x1]
      %v167 = vmul.f32 %v150, %v165
      %v168 = vsub.f32 %v166, %v167
      %v169 = vlaneseq
      %v170 = vshrl.u32 %v169, 7
      %v171 = vsub.s32 0, %v170
      %v172 = vrot.slane %v165, %v171
      %v173 = vmul.f32 %v143, %v172
      %v174 = vlaneseq
      %v175 = vshrl.u32 %v174, 7
      %v176 = vsub.s32 0, %v175
      %v177 = vrot.slane %v168, %v176
      %v178 = vadd.f32 %v173, %v177
      %v179 = vmax.f32 %v178, 0.0
      %180 = vst [vmem:[#allocation7] sm:$0xff] %v179
    $region29: #{tpu_custom_call.1} parent=1 // pred_fallthru
      _
    // Predicated region
    $region30: #{tpu_custom_call.1} parent=1 // pred_check
      _
    $region31: #{tpu_custom_call.1} parent=1 // pred_check_branch
      %182 = sbr.rel (0) target = $region33
    $region32: #{tpu_custom_call.1} parent=1 // pred_region
      %s184 = ssub.s32 128, 128
      %185 = vsyncadd [#allocation4], %s184
      %s187 = sshll.u32 [#allocation7], 4
      %s188 = int_to_ptr.vmem [resolvable:$true] %s187
      %190 = dma.vmem_to_hbm [thread:$0]  %s188, 128, %s3, [#allocation4]
    $region33: #{tpu_custom_call.1} parent=1 // pred_fallthru
      _
    // Predicated region
    $region34: #{tpu_custom_call.1} parent=1 // pred_check
      _
    $region35: #{tpu_custom_call.1} parent=1 // pred_check_branch
      %192 = sbr.rel (0) target = $region37
    $region36: #{tpu_custom_call.1} parent=1 // pred_region
      %193 = dma.done [#allocation4], 128
    $region37: #{tpu_custom_call.1} parent=1 // pred_fallthru
      _
    %194 = vsyncpa [#allocation3], 1
    %195 = vsyncpa [#allocation6], 1
    %196 = vsyncpa [#allocation4], 1

</llo_original>
